<compile_context>
chip_gen: v5e
topology: v5e:2x2
jax: 0.10.0
libtpu: 0.0.40
codegen_flags: <defaults>
</compile_context>

<pallas_src>
import functools

import jax
import jax.numpy as jnp
from jax import lax
from jax.experimental import pallas as pl
from jax.experimental.pallas import tpu as pltpu


def _round_up(x: int, m: int) -> int:
    return (x + m - 1) // m * m


def _vmem_capacity_bytes(default: int = 64 << 20) -> int:
    try:
        return int(pltpu.get_tpu_info().vmem_capacity_bytes)
    except Exception:  # pragma: no cover - conservative fallback
        return default


# ----------------------------- conv path kernel -----------------------------
def _conv_down_kernel(pe_ref, po_ref, w_ref, b_ref, o_ref, *, owp):
    # pe_ref / po_ref: (L, 2*Cp)   even/odd-row planes, column-pair packed, spatially flat
    # w_ref          : (6, 2*Cp, T_OC)  fused weights: t = 2*kh + {0: kw01, 1: kw2|zeros}
    # b_ref          : (1, T_OC)   f32 bias (zero-padded)
    # o_ref          : (M, T_OC)   M = OH * (OW + 1); column OW of each row is junk
    m, t_oc = o_ref.shape
    acc = jnp.zeros((m, t_oc), jnp.float32)
    # (kernel row, source plane, flattened row offset)
    for kh, plane, base in ((0, pe_ref, 0), (1, po_ref, 0), (2, pe_ref, owp)):
        p01 = plane[pl.ds(base, m), :]          # taps kw=0,1  (contiguous, aligned)
        p2 = plane[pl.ds(base + 1, m), :]       # tap  kw=2    (contiguous, +1 offset)
        acc = acc + jnp.dot(p01, w_ref[2 * kh + 0], preferred_element_type=jnp.float32)
        acc = acc + jnp.dot(p2, w_ref[2 * kh + 1], preferred_element_type=jnp.float32)
    acc = acc + b_ref[...]                      # (1, T_OC) broadcast, f32
    o_ref[...] = acc.astype(o_ref.dtype)


def downsample2d_conv(x_nchw, weight_oihw, bias=None, padding=1):
    """Conv2d(C->OC, k=3, stride=2, padding=padding, bias) on NCHW input."""
    N, C, H, W = x_nchw.shape
    OC = weight_oihw.shape[0]
    dtype = x_nchw.dtype
    if bias is None:
        bias = jnp.zeros((OC,), dtype)

    # NCHW -> NHWC (channels on the lane axis)
    x = jnp.transpose(x_nchw, (0, 2, 3, 1))
    if padding == 0:
        # module semantics: F.pad(x, (0,1,0,1)) then conv with padding=0
        x = jnp.pad(x, ((0, 0), (0, 1), (0, 1), (0, 0)))
    else:
        x = jnp.pad(x, ((0, 0), (padding, padding), (padding, padding), (0, 0)))

    Hp0, Wp0 = x.shape[1], x.shape[2]
    OH = (Hp0 - 3) // 2 + 1
    OW = (Wp0 - 3) // 2 + 1
    OHp, OWp = OH + 1, OW + 1          # +1 halo row / column-pair

    Cp = _round_up(C, 64)              # packed lane dim 2*Cp is a multiple of 128
    OCp = _round_up(OC, 128)           # lane-dense output (no masked vst)
    C2 = 2 * Cp

    # Pad to exactly (2*OHp, 2*OWp, Cp) with zeros (extra rows/cols/channels only ever
    # multiply zero weights or land in discarded positions).
    x = jnp.pad(x, ((0, 0), (0, 2 * OHp - Hp0), (0, 2 * OWp - Wp0), (0, Cp - C)))
    # Row-parity split + column-pair packing + spatial flatten (all wrapper-side reshapes,
    # fused by XLA with the transpose/pad pass).
    x = x.reshape(N, OHp, 2, OWp, C2)
    guard = 8                          # zero guard rows so the +1 / +OWp shifted reads stay in-bounds
    plane_e = jnp.pad(x[:, :, 0].reshape(N, OHp * OWp, C2), ((0, 0), (0, guard), (0, 0)))
    plane_o = jnp.pad(x[:, :, 1].reshape(N, OHp * OWp, C2), ((0, 0), (0, guard), (0, 0)))
    L = OHp * OWp + guard
    M = OH * OWp                       # flattened output rows (col OW of each row = junk)

    # Weights (OC, C, 3, 3) -> six fused (2*Cp, OCp) matrices.
    wt = jnp.transpose(weight_oihw.astype(dtype), (2, 3, 1, 0))          # (3,3,C,OC)
    wt = jnp.pad(wt, ((0, 0), (0, 0), (0, Cp - C), (0, OCp - OC)))       # (3,3,Cp,OCp)
    w01 = jnp.concatenate([wt[:, 0], wt[:, 1]], axis=1)                  # (3,2Cp,OCp)
    w2 = jnp.concatenate([wt[:, 2], jnp.zeros((3, Cp, OCp), wt.dtype)], axis=1)
    w_fused = jnp.stack([w01, w2], axis=1).reshape(6, C2, OCp)           # (6,2Cp,OCp)
    b_pad = jnp.pad(bias.astype(jnp.float32), (0, OCp - OC)).reshape(1, OCp)

    # OC tiling (lane-dense, multiple of 128).
    T_OC = OCp if OCp <= 512 else 128
    n_oc = OCp // T_OC
    grid = (N, n_oc)

    # VMEM budget from the actual blocks (double-buffered inputs/outputs + f32 acc + temps),
    # clamped to this generation's capacity (64 MiB on v7x, 128 MiB on v5e/v6e).
    itemsize = jnp.dtype(dtype).itemsize
    need = (2 * 2 * L * C2 * itemsize          # two planes, double-buffered
            + 2 * 6 * C2 * T_OC * itemsize     # fused weights, double-buffered
            + 2 * M * T_OC * itemsize          # output block, double-buffered
            + 4 * M * T_OC * 4                 # f32 accumulator + headroom
            + 2 * M * C2 * itemsize)           # patch temporaries
    vmem_limit = int(min(max(2 * need, 32 << 20), int(_vmem_capacity_bytes() * 0.9)))

    out_flat = pl.pallas_call(
        functools.partial(_conv_down_kernel, owp=OWp),
        out_shape=jax.ShapeDtypeStruct((N, M, OCp), dtype),
        grid=grid,
        in_specs=[
            pl.BlockSpec((None, L, C2), lambda n, j: (n, 0, 0)),   # even-row plane (resident over j)
            pl.BlockSpec((None, L, C2), lambda n, j: (n, 0, 0)),   # odd-row plane
            pl.BlockSpec((6, C2, T_OC), lambda n, j: (0, 0, j)),   # fused weights, OC-tiled
            pl.BlockSpec((1, T_OC), lambda n, j: (0, j)),          # bias, OC-tiled
        ],
        out_specs=pl.BlockSpec((None, M, T_OC), lambda n, j: (n, 0, j)),
        compiler_params=pltpu.CompilerParams(
            dimension_semantics=("parallel", "parallel"),
            vmem_limit_bytes=vmem_limit,
        ),
    )(plane_e, plane_o, w_fused, b_pad)

    # Drop junk column / padded OC, back to NCHW.
    out = out_flat.reshape(N, OH, OWp, OCp)[:, :, :OW, :OC]
    return jnp.transpose(out, (0, 3, 1, 2))


# ---------------------------- avgpool path kernel ----------------------------
def _avgpool_down_kernel(a_ref, b_ref, c_ref, d_ref, o_ref):
    # four 2x2-parity planes, identical block shapes -> pure lane-dense VPU adds
    s = (a_ref[...].astype(jnp.float32) + b_ref[...].astype(jnp.float32)
         + c_ref[...].astype(jnp.float32) + d_ref[...].astype(jnp.float32))
    o_ref[...] = (s * 0.25).astype(o_ref.dtype)


def downsample2d_avgpool(x_nchw):
    """AvgPool2d(kernel=2, stride=2) on NCHW input (requires OC == C in the module)."""
    N, C, H, W = x_nchw.shape
    OH, OW = H // 2, W // 2
    dtype = x_nchw.dtype

    x = jnp.transpose(x_nchw, (0, 2, 3, 1))[:, :2 * OH, :2 * OW, :]   # NHWC, crop odd edge
    x = x.reshape(N, OH, 2, OW, 2, C)
    planes = [x[:, :, i, :, j, :] for i in (0, 1) for j in (0, 1)]    # 4 x (N, OH, OW, C)

    # OH tiling: largest divisor of OH with <= ~1 MiB per plane block.
    itemsize = jnp.dtype(dtype).itemsize
    row_bytes = max(OW * C * itemsize, 1)
    t_oh = max(1, min(OH, (1 << 20) // row_bytes))
    while OH % t_oh:
        t_oh -= 1
    grid = (N, OH // t_oh)

    blk = pl.BlockSpec((None, t_oh, OW, C), lambda n, i: (n, i, 0, 0))
    need = (4 * 2 + 2) * t_oh * OW * C * itemsize + 2 * t_oh * OW * C * 4
    vmem_limit = int(min(max(2 * need, 16 << 20), int(_vmem_capacity_bytes() * 0.9)))

    out_nhwc = pl.pallas_call(
        _avgpool_down_kernel,
        out_shape=jax.ShapeDtypeStruct((N, OH, OW, C), dtype),
        grid=grid,
        in_specs=[blk, blk, blk, blk],
        out_specs=blk,
        compiler_params=pltpu.CompilerParams(
            dimension_semantics=("parallel", "parallel"),
            vmem_limit_bytes=vmem_limit,
        ),
    )(*planes)
    return jnp.transpose(out_nhwc, (0, 3, 1, 2))


# -------------------------------- references ---------------------------------
def _ref_conv(x_nchw, w, b, padding=1):
    x = x_nchw
    if padding == 0:
        x = jnp.pad(x, ((0, 0), (0, 0), (0, 1), (0, 1)))
        pads = [(0, 0), (0, 0)]
    else:
        pads = [(padding, padding), (padding, padding)]
    y = lax.conv_general_dilated(
        x, w, window_strides=(2, 2), padding=pads,
        dimension_numbers=("NCHW", "OIHW", "NCHW"),
    )
    return y + b.reshape(1, -1, 1, 1)


def _ref_avgpool(x_nchw):
    N, C, H, W = x_nchw.shape
    OH, OW = H // 2, W // 2
    x = x_nchw[:, :, :2 * OH, :2 * OW]
    return jnp.mean(x.reshape(N, C, OH, 2, OW, 2), axis=(3, 5))


if __name__ == "__main__":
    key = jax.random.PRNGKey(0)
    k_x, k_w, k_b, k_x2, k_w2, k_b2 = jax.random.split(key, 6)

    # Shapes implied by the module defaults (channels == out_channels).
    N, C, H, W = 2, 4, 16, 16
    OC = C
    x = jax.random.normal(k_x, (N, C, H, W), dtype=jnp.float32)
    fan_in = C * 3 * 3
    bound = 1.0 / (fan_in ** 0.5)
    weight = jax.random.uniform(k_w, (OC, C, 3, 3), jnp.float32, -bound, bound)
    bias = jax.random.uniform(k_b, (OC,), jnp.float32, -bound, bound)

    # use_conv=True, padding=1 (default)
    y_conv = downsample2d_conv(x, weight, bias, padding=1)
    jax.block_until_ready(y_conv)
    y_conv_ref = _ref_conv(x, weight, bias, padding=1)
    assert y_conv.shape == (N, OC, H // 2, W // 2)
    assert jnp.allclose(y_conv, y_conv_ref, atol=1e-4, rtol=1e-4)

    # use_conv=True, padding=0 (module pads (0,1,0,1) then conv with padding=0)
    y_conv0 = downsample2d_conv(x, weight, bias, padding=0)
    jax.block_until_ready(y_conv0)
    y_conv0_ref = _ref_conv(x, weight, bias, padding=0)
    assert y_conv0.shape == y_conv0_ref.shape
    assert jnp.allclose(y_conv0, y_conv0_ref, atol=1e-4, rtol=1e-4)

    # ragged channels / odd spatial / OC != C
    C2_, OC2, H2, W2 = 3, 5, 9, 11
    x2 = jax.random.normal(k_x2, (1, C2_, H2, W2), dtype=jnp.float32)
    w2 = jax.random.uniform(k_w2, (OC2, C2_, 3, 3), jnp.float32, -0.3, 0.3)
    b2 = jax.random.uniform(k_b2, (OC2,), jnp.float32, -0.3, 0.3)
    y2 = downsample2d_conv(x2, w2, b2, padding=1)
    jax.block_until_ready(y2)
    y2_ref = _ref_conv(x2, w2, b2, padding=1)
    assert y2.shape == y2_ref.shape
    assert jnp.allclose(y2, y2_ref, atol=1e-4, rtol=1e-4)

    # use_conv=False path (AvgPool2d(2, 2))
    y_pool = downsample2d_avgpool(x)
    jax.block_until_ready(y_pool)
    y_pool_ref = _ref_avgpool(x)
    assert y_pool.shape == (N, C, H // 2, W // 2)
    assert jnp.allclose(y_pool, y_pool_ref, atol=1e-5, rtol=1e-5)

    print("KERNEL_OK")
</pallas_src>

<mosaic_0001>
module attributes {stable_mosaic.version = 11 : i64} {
  func.func @_conv_down_kernel(%arg0: i32, %arg1: i32, %arg2: memref<1x89x128xf32, #tpu.memory_space<vmem>>, %arg3: memref<1x89x128xf32, #tpu.memory_space<vmem>>, %arg4: memref<6x128x128xf32, #tpu.memory_space<vmem>>, %arg5: memref<1x128xf32, #tpu.memory_space<vmem>>, %arg6: memref<1x72x128xf32, #tpu.memory_space<vmem>>) attributes {dimension_semantics = [#tpu.dimension_semantics<parallel>, #tpu.dimension_semantics<parallel>], iteration_bounds = array<i64: 2, 1>, scalar_prefetch = 0 : i64, scratch_operands = 0 : i64, tpu.core_type = #tpu.core_type<tc>, window_params = [{transform_indices = @transform_0, window_bounds = array<i64: 1, 89, 128>}, {transform_indices = @transform_1, window_bounds = array<i64: 1, 89, 128>}, {transform_indices = @transform_2, window_bounds = array<i64: 6, 128, 128>}, {transform_indices = @transform_3, window_bounds = array<i64: 1, 128>}, {transform_indices = @transform_4, window_bounds = array<i64: 1, 72, 128>}]} {
    %cst = arith.constant 0.000000e+00 : f32
    %0 = vector.broadcast %cst : f32 to vector<72x128xf32>
    %c0 = arith.constant 0 : index
    %c0_0 = arith.constant 0 : index
    %c0_1 = arith.constant 0 : index
    %1 = vector.load %arg2[%c0, %c0_0, %c0_1] : memref<1x89x128xf32, #tpu.memory_space<vmem>>, vector<1x72x128xf32>
    %2 = vector.shape_cast %1 : vector<1x72x128xf32> to vector<72x128xf32>
    %c0_2 = arith.constant 0 : index
    %c1 = arith.constant 1 : index
    %c0_3 = arith.constant 0 : index
    %3 = vector.load %arg2[%c0_2, %c1, %c0_3] : memref<1x89x128xf32, #tpu.memory_space<vmem>>, vector<1x72x128xf32>
    %4 = vector.shape_cast %3 : vector<1x72x128xf32> to vector<72x128xf32>
    %c0_4 = arith.constant 0 : index
    %c0_5 = arith.constant 0 : index
    %c0_6 = arith.constant 0 : index
    %5 = vector.load %arg4[%c0_4, %c0_5, %c0_6] : memref<6x128x128xf32, #tpu.memory_space<vmem>>, vector<1x128x128xf32>
    %6 = vector.shape_cast %5 : vector<1x128x128xf32> to vector<128x128xf32>
    %cst_7 = arith.constant dense<0.000000e+00> : vector<72x128xf32>
    %7 = tpu.matmul %2, %6, %cst_7 {dimension_numbers = #tpu.dot_dimension_numbers<[1], [0], [0], [1], [0, 0, 1, 1], [], []>} : vector<72x128xf32>, vector<128x128xf32>, vector<72x128xf32> -> vector<72x128xf32>
    %8 = arith.addf %0, %7 : vector<72x128xf32>
    %c1_8 = arith.constant 1 : index
    %c0_9 = arith.constant 0 : index
    %c0_10 = arith.constant 0 : index
    %9 = vector.load %arg4[%c1_8, %c0_9, %c0_10] : memref<6x128x128xf32, #tpu.memory_space<vmem>>, vector<1x128x128xf32>
    %10 = vector.shape_cast %9 : vector<1x128x128xf32> to vector<128x128xf32>
    %cst_11 = arith.constant dense<0.000000e+00> : vector<72x128xf32>
    %11 = tpu.matmul %4, %10, %cst_11 {dimension_numbers = #tpu.dot_dimension_numbers<[1], [0], [0], [1], [0, 0, 1, 1], [], []>} : vector<72x128xf32>, vector<128x128xf32>, vector<72x128xf32> -> vector<72x128xf32>
    %12 = arith.addf %8, %11 : vector<72x128xf32>
    %c0_12 = arith.constant 0 : index
    %c0_13 = arith.constant 0 : index
    %c0_14 = arith.constant 0 : index
    %13 = vector.load %arg3[%c0_12, %c0_13, %c0_14] : memref<1x89x128xf32, #tpu.memory_space<vmem>>, vector<1x72x128xf32>
    %14 = vector.shape_cast %13 : vector<1x72x128xf32> to vector<72x128xf32>
    %c0_15 = arith.constant 0 : index
    %c1_16 = arith.constant 1 : index
    %c0_17 = arith.constant 0 : index
    %15 = vector.load %arg3[%c0_15, %c1_16, %c0_17] : memref<1x89x128xf32, #tpu.memory_space<vmem>>, vector<1x72x128xf32>
    %16 = vector.shape_cast %15 : vector<1x72x128xf32> to vector<72x128xf32>
    %c2 = arith.constant 2 : index
    %c0_18 = arith.constant 0 : index
    %c0_19 = arith.constant 0 : index
    %17 = vector.load %arg4[%c2, %c0_18, %c0_19] : memref<6x128x128xf32, #tpu.memory_space<vmem>>, vector<1x128x128xf32>
    %18 = vector.shape_cast %17 : vector<1x128x128xf32> to vector<128x128xf32>
    %cst_20 = arith.constant dense<0.000000e+00> : vector<72x128xf32>
    %19 = tpu.matmul %14, %18, %cst_20 {dimension_numbers = #tpu.dot_dimension_numbers<[1], [0], [0], [1], [0, 0, 1, 1], [], []>} : vector<72x128xf32>, vector<128x128xf32>, vector<72x128xf32> -> vector<72x128xf32>
    %20 = arith.addf %12, %19 : vector<72x128xf32>
    %c3 = arith.constant 3 : index
    %c0_21 = arith.constant 0 : index
    %c0_22 = arith.constant 0 : index
    %21 = vector.load %arg4[%c3, %c0_21, %c0_22] : memref<6x128x128xf32, #tpu.memory_space<vmem>>, vector<1x128x128xf32>
    %22 = vector.shape_cast %21 : vector<1x128x128xf32> to vector<128x128xf32>
    %cst_23 = arith.constant dense<0.000000e+00> : vector<72x128xf32>
    %23 = tpu.matmul %16, %22, %cst_23 {dimension_numbers = #tpu.dot_dimension_numbers<[1], [0], [0], [1], [0, 0, 1, 1], [], []>} : vector<72x128xf32>, vector<128x128xf32>, vector<72x128xf32> -> vector<72x128xf32>
    %24 = arith.addf %20, %23 : vector<72x128xf32>
    %c0_24 = arith.constant 0 : index
    %c9 = arith.constant 9 : index
    %c0_25 = arith.constant 0 : index
    %25 = vector.load %arg2[%c0_24, %c9, %c0_25] : memref<1x89x128xf32, #tpu.memory_space<vmem>>, vector<1x72x128xf32>
    %26 = vector.shape_cast %25 : vector<1x72x128xf32> to vector<72x128xf32>
    %c0_26 = arith.constant 0 : index
    %c10 = arith.constant 10 : index
    %c0_27 = arith.constant 0 : index
    %27 = vector.load %arg2[%c0_26, %c10, %c0_27] : memref<1x89x128xf32, #tpu.memory_space<vmem>>, vector<1x72x128xf32>
    %28 = vector.shape_cast %27 : vector<1x72x128xf32> to vector<72x128xf32>
    %c4 = arith.constant 4 : index
    %c0_28 = arith.constant 0 : index
    %c0_29 = arith.constant 0 : index
    %29 = vector.load %arg4[%c4, %c0_28, %c0_29] : memref<6x128x128xf32, #tpu.memory_space<vmem>>, vector<1x128x128xf32>
    %30 = vector.shape_cast %29 : vector<1x128x128xf32> to vector<128x128xf32>
    %cst_30 = arith.constant dense<0.000000e+00> : vector<72x128xf32>
    %31 = tpu.matmul %26, %30, %cst_30 {dimension_numbers = #tpu.dot_dimension_numbers<[1], [0], [0], [1], [0, 0, 1, 1], [], []>} : vector<72x128xf32>, vector<128x128xf32>, vector<72x128xf32> -> vector<72x128xf32>
    %32 = arith.addf %24, %31 : vector<72x128xf32>
    %c5 = arith.constant 5 : index
    %c0_31 = arith.constant 0 : index
    %c0_32 = arith.constant 0 : index
    %33 = vector.load %arg4[%c5, %c0_31, %c0_32] : memref<6x128x128xf32, #tpu.memory_space<vmem>>, vector<1x128x128xf32>
    %34 = vector.shape_cast %33 : vector<1x128x128xf32> to vector<128x128xf32>
    %cst_33 = arith.constant dense<0.000000e+00> : vector<72x128xf32>
    %35 = tpu.matmul %28, %34, %cst_33 {dimension_numbers = #tpu.dot_dimension_numbers<[1], [0], [0], [1], [0, 0, 1, 1], [], []>} : vector<72x128xf32>, vector<128x128xf32>, vector<72x128xf32> -> vector<72x128xf32>
    %36 = arith.addf %32, %35 : vector<72x128xf32>
    %c0_34 = arith.constant 0 : index
    %c0_35 = arith.constant 0 : index
    %37 = vector.load %arg5[%c0_34, %c0_35] : memref<1x128xf32, #tpu.memory_space<vmem>>, vector<1x128xf32>
    %38 = vector.broadcast %37 : vector<1x128xf32> to vector<72x128xf32>
    %39 = arith.addf %36, %38 : vector<72x128xf32>
    %c0_36 = arith.constant 0 : index
    %c0_37 = arith.constant 0 : index
    %c0_38 = arith.constant 0 : index
    %40 = vector.load %arg6[%c0_36, %c0_37, %c0_38] : memref<1x72x128xf32, #tpu.memory_space<vmem>>, vector<1x72x128xf32>
    %41 = vector.shape_cast %40 : vector<1x72x128xf32> to vector<72x128xf32>
    %42 = vector.shape_cast %39 : vector<72x128xf32> to vector<1x72x128xf32>
    tpu.vector_store %arg6[%c0_36, %c0_37, %c0_38], %42 {strides = array<i32>} : memref<1x72x128xf32, #tpu.memory_space<vmem>>, vector<1x72x128xf32>,
    return
  }
  func.func @transform_0(%arg0: i32, %arg1: i32) -> (i32, i32, i32) {
    %c0_i32 = arith.constant 0 : i32
    %c0_i32_0 = arith.constant 0 : i32
    %c0_i32_1 = arith.constant 0 : i32
    return %arg0, %c0_i32, %c0_i32_0 : i32, i32, i32
  }
  func.func @transform_1(%arg0: i32, %arg1: i32) -> (i32, i32, i32) {
    %c0_i32 = arith.constant 0 : i32
    %c0_i32_0 = arith.constant 0 : i32
    %c0_i32_1 = arith.constant 0 : i32
    return %arg0, %c0_i32, %c0_i32_0 : i32, i32, i32
  }
  func.func @transform_2(%arg0: i32, %arg1: i32) -> (i32, i32, i32) {
    %c0_i32 = arith.constant 0 : i32
    %c0_i32_0 = arith.constant 0 : i32
    %c0_i32_1 = arith.constant 0 : i32
    return %c0_i32, %c0_i32_0, %arg1 : i32, i32, i32
  }
  func.func @transform_3(%arg0: i32, %arg1: i32) -> (i32, i32) {
    %c0_i32 = arith.constant 0 : i32
    %c0_i32_0 = arith.constant 0 : i32
    return %c0_i32, %arg1 : i32, i32
  }
  func.func @transform_4(%arg0: i32, %arg1: i32) -> (i32, i32, i32) {
    %c0_i32 = arith.constant 0 : i32
    %c0_i32_0 = arith.constant 0 : i32
    return %arg0, %c0_i32, %arg1 : i32, i32, i32
  }
}

</mosaic_0001>

<llo_original>
// kernel: tpu_custom_call.1
$region0: #{tpu_custom_call.1}
  #allocation0 [shape = 'u32[]', space=smem, size = 0x4, offset = 0x4, fixed_abs, tag = 'smem constant byte address 0x4 - core index']
  #allocation1 [shape = 'u32[72,128]{1,0:T(1,128)}', space=vmem, size = 0x9000, scoped, tag = 'internal scratch']
  %s0 = inlined_call_operand.vmem [shape: f32[2,89,128], index: 0, kind: input, shape index: {}]
  %s1 = inlined_call_operand.vmem [shape: f32[2,89,128], index: 1, kind: input, shape index: {}]
  %s2 = inlined_call_operand.hbm [shape: f32[6,128,128], index: 2, kind: input, shape index: {}]
  %s3 = inlined_call_operand.vmem [shape: f32[1,128], index: 3, kind: input, shape index: {}]
  %s4 = inlined_call_operand.hbm [shape: f32[2,72,128], index: 4, kind: output, shape index: {}]
  %s5 = sld [smem:[#allocation0]]
  $region53: #{tpu_custom_call.1} parent=0
    _
  %s7 = ssub.s32 1, %s5
  %s8 = scalar_select 0, %s7, %s5
  $region1: #{tpu_custom_call.1} parent=0
    #allocation2 [shape = 'u8[393216]{0}', space=vmem, size = 0x60000, scoped, tag = 'input window, operand 2, single buffered']
    #allocation3 [shape = 's32[2]{0}', space=sflag, size = 0x8, scoped, tag = 'scoped memory for tpu_custom_call.1']
    #allocation4 [shape = 's32[2]{0}', space=sflag, size = 0x8, scoped, tag = 'scoped memory for tpu_custom_call.1']
    #allocation5 [shape = 'u8[73728]{0}', space=vmem, size = 0x12000, scoped, tag = 'output window, operand 0']
    %9 = vsyncpa [#allocation3], 0
    %10 = vsyncpa [#allocation4], 0
    %s11 = scalar_lea.sflag [#allocation4], 1
    %12 = vsyncpa %s11, 0
    loop: start=0, step=1, limit=4
    $region2: #{tpu_custom_call.1} parent=1 // loop_pre_header
      _
    $region3: #{tpu_custom_call.1} parent=1 // loop_header
      %s14 = sphi 0, %s18
      %p15 = scmp.ge.s32.totalorder %s14, 4
      %s21 = sphi 0, %s33
      %s22 = sphi 0, %s29
      %s23 = sphi 0, %s21
      %s24 = sphi 0, %s22
      %s25 = sphi 0, %s23
      %s26 = sphi 0, %s24
      %s36 = sphi 0, %s38
      %s39 = sphi 0, %s36
      %s40 = sphi 0, %s39
      %s56 = sphi 0, %s40
      %s62 = sphi 0, %s64
      %s65 = sphi 0, %s62
      %s66 = sphi 0, %s65
      %s82 = sphi 0, %s66
      %s88 = sphi 0, %s90
      %s91 = sphi 0, %s88
      %s92 = sphi 0, %s91
      %s108 = sphi 0, %s92
      %s114 = sphi 0, %s116
      %s117 = sphi 0, %s114
      %s118 = sphi 0, %s117
      %s134 = sphi 0, %s118
      %s142 = sphi 0, %s144
      %s145 = sphi 0, %s142
      %s146 = sphi 0, %s145
      %s162 = sphi 0, %s146
    $region4: #{tpu_custom_call.1} parent=1 // loop_header_branch
      %17 = sbr.rel (%p15) target = $region8
    $region5: #{tpu_custom_call.1} parent=1 // loop_body
      %s19 = ssub.s32 %s14, 1
      %s20 = ssub.s32 %s14, 2
      %s27 = sadd.s32 1, %s22
      %p28 = scmp.ge.s32.totalorder %s27, 1
      %s29 = scalar_select %p28, 0, %s27
      %s30 = sadd.s32 1, %s21
      %s31 = scalar_select %p28, %s30, %s21
      %p32 = scmp.ge.s32.totalorder %s31, 2
      %s33 = scalar_select %p32, 0, %s31
      %s34 = ssub.s32 %s21, %s33
      %p35 = scmp.eq.s32.totalorder %s34, 0
      %s37 = sadd.s32 %s36, 1
      %s38 = scalar_select %p35, %s36, %s37
      %p41 = pneg %p35
      %p42 = scmp.eq.s32.totalorder %s14, 1
      %p43 = por %p41, %p42
      %p44 = scmp.ne.s32.totalorder %s36, %s39
      %p45 = scmp.eq.s32.totalorder %s14, 0
      %p46 = por %p44, %p45
      %p47 = scmp.ne.s32.totalorder %s36, %s39
      %p48 = scmp.eq.s32.totalorder %s19, 1
      %p49 = por %p47, %p48
      %p50 = scmp.ne.s32.totalorder %s39, %s40
      %p51 = scmp.eq.s32.totalorder %s19, 0
      %p52 = por %p50, %p51
      %p53 = scmp.ne.s32.totalorder %s39, %s40
      %p54 = scmp.eq.s32.totalorder %s20, 1
      %p55 = por %p53, %p54
      %p57 = scmp.ne.s32.totalorder %s40, %s56
      %p58 = scmp.eq.s32.totalorder %s20, 0
      %p59 = por %p57, %p58
      %s60 = ssub.s32 %s21, %s33
      %p61 = scmp.eq.s32.totalorder %s60, 0
      %s63 = sadd.s32 %s62, 1
      %s64 = scalar_select %p61, %s62, %s63
      %p67 = pneg %p61
      %p68 = scmp.eq.s32.totalorder %s14, 1
      %p69 = por %p67, %p68
      %p70 = scmp.ne.s32.totalorder %s62, %s65
      %p71 = scmp.eq.s32.totalorder %s14, 0
      %p72 = por %p70, %p71
      %p73 = scmp.ne.s32.totalorder %s62, %s65
      %p74 = scmp.eq.s32.totalorder %s19, 1
      %p75 = por %p73, %p74
      %p76 = scmp.ne.s32.totalorder %s65, %s66
      %p77 = scmp.eq.s32.totalorder %s19, 0
      %p78 = por %p76, %p77
      %p79 = scmp.ne.s32.totalorder %s65, %s66
      %p80 = scmp.eq.s32.totalorder %s20, 1
      %p81 = por %p79, %p80
      %p83 = scmp.ne.s32.totalorder %s66, %s82
      %p84 = scmp.eq.s32.totalorder %s20, 0
      %p85 = por %p83, %p84
      %s86 = ssub.s32 %s22, %s29
      %p87 = scmp.eq.s32.totalorder %s86, 0
      %s89 = sadd.s32 %s88, 1
      %s90 = scalar_select %p87, %s88, %s89
      %p93 = pneg %p87
      %p94 = scmp.eq.s32.totalorder %s14, 1
      %p95 = por %p93, %p94
      %p96 = scmp.ne.s32.totalorder %s88, %s91
      %p97 = scmp.eq.s32.totalorder %s14, 0
      %p98 = por %p96, %p97
      %p99 = scmp.ne.s32.totalorder %s88, %s91
      %p100 = scmp.eq.s32.totalorder %s19, 1
      %p101 = por %p99, %p100
      %p102 = scmp.ne.s32.totalorder %s91, %s92
      %p103 = scmp.eq.s32.totalorder %s19, 0
      %p104 = por %p102, %p103
      %p105 = scmp.ne.s32.totalorder %s91, %s92
      %p106 = scmp.eq.s32.totalorder %s20, 1
      %p107 = por %p105, %p106
      %p109 = scmp.ne.s32.totalorder %s92, %s108
      %p110 = scmp.eq.s32.totalorder %s20, 0
      %p111 = por %p109, %p110
      %s112 = ssub.s32 %s22, %s29
      %p113 = scmp.eq.s32.totalorder %s112, 0
      %s115 = sadd.s32 %s114, 1
      %s116 = scalar_select %p113, %s114, %s115
      %p119 = pneg %p113
      %p120 = scmp.eq.s32.totalorder %s14, 1
      %p121 = por %p119, %p120
      %p122 = scmp.ne.s32.totalorder %s114, %s117
      %p123 = scmp.eq.s32.totalorder %s14, 0
      %p124 = por %p122, %p123
      %p125 = scmp.ne.s32.totalorder %s114, %s117
      %p126 = scmp.eq.s32.totalorder %s19, 1
      %p127 = por %p125, %p126
      %p128 = scmp.ne.s32.totalorder %s117, %s118
      %p129 = scmp.eq.s32.totalorder %s19, 0
      %p130 = por %p128, %p129
      %p131 = scmp.ne.s32.totalorder %s117, %s118
      %p132 = scmp.eq.s32.totalorder %s20, 1
      %p133 = por %p131, %p132
      %p135 = scmp.ne.s32.totalorder %s118, %s134
      %p136 = scmp.eq.s32.totalorder %s20, 0
      %p137 = por %p135, %p136
      %s138 = ssub.s32 %s21, %s33
      %s139 = ssub.s32 %s22, %s29
      %s140 = sor.u32 %s138, %s139
      %p141 = scmp.eq.s32.totalorder %s140, 0
      %s143 = sadd.s32 %s142, 1
      %s144 = scalar_select %p141, %s142, %s143
      %p147 = pneg %p141
      %p148 = scmp.eq.s32.totalorder %s14, 1
      %p149 = por %p147, %p148
      %p150 = scmp.ne.s32.totalorder %s142, %s145
      %p151 = scmp.eq.s32.totalorder %s14, 0
      %p152 = por %p150, %p151
      %p153 = scmp.ne.s32.totalorder %s142, %s145
      %p154 = scmp.eq.s32.totalorder %s19, 1
      %p155 = por %p153, %p154
      %p156 = scmp.ne.s32.totalorder %s145, %s146
      %p157 = scmp.eq.s32.totalorder %s19, 0
      %p158 = por %p156, %p157
      %p159 = scmp.ne.s32.totalorder %s145, %s146
      %p160 = scmp.eq.s32.totalorder %s20, 1
      %p161 = por %p159, %p160
      %p163 = scmp.ne.s32.totalorder %s146, %s162
      %p164 = scmp.eq.s32.totalorder %s20, 0
      %p165 = por %p163, %p164
      %p166 = scmp.le.s32.totalorder 1, %s14
      %p167 = scmp.lt.s32.totalorder %s14, 3
      %p168 = pnand %p166, %p167
      %p169 = pneg %p168
      // Predicated region
      $region9: #{tpu_custom_call.1} parent=5 // pred_check
        _
      $region10: #{tpu_custom_call.1} parent=5 // pred_check_branch
        %171 = sbr.rel (%p168) target = $region12
      $region11: #{tpu_custom_call.1} parent=5 // pred_region
        %s172 = ssub.s32 %s14, 1
        // Predicated region
        $region13: #{tpu_custom_call.1} parent=11 // pred_check
          %p173 = pneg %p104
        $region14: #{tpu_custom_call.1} parent=11 // pred_check_branch
          %175 = sbr.rel (%p173) target = $region16
        $region15: #{tpu_custom_call.1} parent=11 // pred_region
          %177 = vsyncadd [#allocation3], 0
          %s178 = smul.addr %s24, 8
          %s179 = scalar_lea.hbm %s2, %s178
          %s180 = sshll.u32 %s179, 4
          %s181 = int_to_ptr.hbm [resolvable:$true] %s180
          %s182 = sshll.u32 [#allocation2], 4
          %s183 = int_to_ptr.vmem [resolvable:$true] %s182
          %188 = dma.hbm_to_vmem [thread:$0]  %s181, 12288, %s183, [#allocation3], 128, 128, 8
        $region16: #{tpu_custom_call.1} parent=11 // pred_fallthru
          _
        // Predicated region
        $region17: #{tpu_custom_call.1} parent=11 // pred_check
          %p189 = pneg %p130
        $region18: #{tpu_custom_call.1} parent=11 // pred_check_branch
          %191 = sbr.rel (%p189) target = $region20
        $region19: #{tpu_custom_call.1} parent=11 // pred_region
          %p192 = scmp.lt.s32.totalorder %s24, 0
          %s193 = scalar_select %p192, %s24, 0
          %s194 = scalar_lea.vmem %s3, %s193
        $region20: #{tpu_custom_call.1} parent=11 // pred_fallthru
          _
      $region12: #{tpu_custom_call.1} parent=5 // pred_fallthru
        _
      %p195 = scmp.lt.s32.totalorder %s14, 2
      // Predicated region
      $region21: #{tpu_custom_call.1} parent=5 // pred_check
        %p196 = pneg %p195
      $region22: #{tpu_custom_call.1} parent=5 // pred_check_branch
        %198 = sbr.rel (%p196) target = $region24
      $region23: #{tpu_custom_call.1} parent=5 // pred_region
        // Predicated region
        $region25: #{tpu_custom_call.1} parent=23 // pred_check
          %p199 = pneg %p46
        $region26: #{tpu_custom_call.1} parent=23 // pred_check_branch
          %201 = sbr.rel (%p199) target = $region28
        $region27: #{tpu_custom_call.1} parent=23 // pred_region
          %p202 = scmp.lt.s32.totalorder %s21, 1
          %s203 = scalar_select %p202, %s21, 1
          %s204 = smul.addr %s203, 12
          %s205 = smul.addr %s204, 8
          %s206 = scalar_lea.vmem %s0, %s205
        $region28: #{tpu_custom_call.1} parent=23 // pred_fallthru
          _
        // Predicated region
        $region29: #{tpu_custom_call.1} parent=23 // pred_check
          %p207 = pneg %p72
        $region30: #{tpu_custom_call.1} parent=23 // pred_check_branch
          %209 = sbr.rel (%p207) target = $region32
        $region31: #{tpu_custom_call.1} parent=23 // pred_region
          %p210 = scmp.lt.s32.totalorder %s21, 1
          %s211 = scalar_select %p210, %s21, 1
          %s212 = smul.addr %s211, 12
          %s213 = smul.addr %s212, 8
          %s214 = scalar_lea.vmem %s1, %s213
        $region32: #{tpu_custom_call.1} parent=23 // pred_fallthru
          _
      $region24: #{tpu_custom_call.1} parent=5 // pred_fallthru
        _
      %p215 = scmp.le.s32.totalorder 1, %s14
      %p216 = scmp.lt.s32.totalorder %s14, 3
      %p217 = pnand %p215, %p216
      %p218 = pneg %p217
      // Predicated region
      $region33: #{tpu_custom_call.1} parent=5 // pred_check
        _
      $region34: #{tpu_custom_call.1} parent=5 // pred_check_branch
        %220 = sbr.rel (%p217) target = $region36
      $region35: #{tpu_custom_call.1} parent=5 // pred_region
        %s221 = ssub.s32 %s14, 1
        // Predicated region
        $region37: #{tpu_custom_call.1} parent=35 // pred_check
          %p222 = pneg %p104
        $region38: #{tpu_custom_call.1} parent=35 // pred_check_branch
          %224 = sbr.rel (%p222) target = $region40
        $region39: #{tpu_custom_call.1} parent=35 // pred_region
          %226 = dma.done [#allocation3], 12288
        $region40: #{tpu_custom_call.1} parent=35 // pred_fallthru
          _
        %p227 = scmp.lt.s32.totalorder %s23, 1
        %s228 = scalar_select %p227, %s23, 1
        %s229 = smul.addr %s228, 12
        %s230 = smul.addr %s229, 8
        %s231 = scalar_lea.vmem %s0, %s230
        %p232 = pneg %p52
        %p233 = pneg %p49
        %p234 = scmp.lt.s32.totalorder %s23, 1
        %s235 = scalar_select %p234, %s23, 1
        %s236 = smul.addr %s235, 12
        %s237 = smul.addr %s236, 8
        %s238 = scalar_lea.vmem %s1, %s237
        %p239 = pneg %p78
        %p240 = pneg %p75
        %p241 = pneg %p104
        %p242 = pneg %p101
        %p243 = scmp.lt.s32.totalorder %s24, 0
        %s244 = scalar_select %p243, %s24, 0
        %s245 = scalar_lea.vmem %s3, %s244
        %p246 = pneg %p130
        %p247 = pneg %p127
        %p248 = pneg %p158
        %p249 = pneg %p155
        %s250 = sand.u32 %s145, 1
        %s251 = scalar_lea.sflag [#allocation4], %s250
        %s252 = sand.u32 %s145, 1
        %s253 = smul.addr %s252, 72
        %s254 = scalar_lea.vmem [#allocation5], %s253
        %p255 = scmp.lt.s32.totalorder %s23, 1
        %s256 = scalar_select %p255, %s23, 1
        %s257 = smul.addr %s256, 12
        %s258 = smul.addr %s257, 8
        %s259 = scalar_lea.vmem %s0, %s258
        %p260 = scmp.lt.s32.totalorder %s23, 1
        %s261 = scalar_select %p260, %s23, 1
        %s262 = smul.addr %s261, 12
        %s263 = smul.addr %s262, 8
        %s264 = scalar_lea.vmem %s1, %s263
        %p265 = scmp.lt.s32.totalorder %s24, 0
        %s266 = scalar_select %p265, %s24, 0
        %s267 = scalar_lea.vmem %s3, %s266
        %v268 = vld [vmem:[%s259] sm:$0xff]
        %v269 = vld [vmem:[%s259 + $0x8] sm:$0xff]
        %v270 = vld [vmem:[%s259 + $0x10] sm:$0xff]
        %v271 = vld [vmem:[%s259 + $0x18] sm:$0xff]
        %v272 = vld [vmem:[%s259 + $0x20] sm:$0xff]
        %v273 = vld [vmem:[%s259 + $0x28] sm:$0xff]
        %v274 = vld [vmem:[%s259 + $0x30] sm:$0xff]
        %v275 = vld [vmem:[%s259 + $0x38] sm:$0xff]
        %v276 = vld [vmem:[%s259 + $0x40] sm:$0xff]
        %v277 = vld [vmem:[%s259 + $0x1] sm:$0xff]
        %v278 = vld [vmem:[%s259 + $0x9] sm:$0xff]
        %v279 = vld [vmem:[%s259 + $0x11] sm:$0xff]
        %v280 = vld [vmem:[%s259 + $0x19] sm:$0xff]
        %v281 = vld [vmem:[%s259 + $0x21] sm:$0xff]
        %v282 = vld [vmem:[%s259 + $0x29] sm:$0xff]
        %v283 = vld [vmem:[%s259 + $0x31] sm:$0xff]
        %v284 = vld [vmem:[%s259 + $0x39] sm:$0xff]
        %v285 = vld [vmem:[%s259 + $0x41] sm:$0xff]
        %v286 = vld [vmem:[#allocation2] sm:$0xff]
        %v287 = vld [vmem:[#allocation2 + $0x8] sm:$0xff]
        %v288 = vld [vmem:[#allocation2 + $0x10] sm:$0xff]
        %v289 = vld [vmem:[#allocation2 + $0x18] sm:$0xff]
        %v290 = vld [vmem:[#allocation2 + $0x20] sm:$0xff]
        %v291 = vld [vmem:[#allocation2 + $0x28] sm:$0xff]
        %v292 = vld [vmem:[#allocation2 + $0x30] sm:$0xff]
        %v293 = vld [vmem:[#allocation2 + $0x38] sm:$0xff]
        %v294 = vld [vmem:[#allocation2 + $0x40] sm:$0xff]
        %v295 = vld [vmem:[#allocation2 + $0x48] sm:$0xff]
        %v296 = vld [vmem:[#allocation2 + $0x50] sm:$0xff]
        %v297 = vld [vmem:[#allocation2 + $0x58] sm:$0xff]
        %v298 = vld [vmem:[#allocation2 + $0x60] sm:$0xff]
        %v299 = vld [vmem:[#allocation2 + $0x68] sm:$0xff]
        %v300 = vld [vmem:[#allocation2 + $0x70] sm:$0xff]
        %v301 = vld [vmem:[#allocation2 + $0x78] sm:$0xff]
        %s302 = scalar_lea.vmem [#allocation2], 128
        %v303 = vld [vmem:[%s302] sm:$0xff]
        %v304 = vld [vmem:[%s302 + $0x8] sm:$0xff]
        %v305 = vld [vmem:[%s302 + $0x10] sm:$0xff]
        %v306 = vld [vmem:[%s302 + $0x18] sm:$0xff]
        %v307 = vld [vmem:[%s302 + $0x20] sm:$0xff]
        %v308 = vld [vmem:[%s302 + $0x28] sm:$0xff]
        %v309 = vld [vmem:[%s302 + $0x30] sm:$0xff]
        %v310 = vld [vmem:[%s302 + $0x38] sm:$0xff]
        %v311 = vld [vmem:[%s302 + $0x40] sm:$0xff]
        %v312 = vld [vmem:[%s302 + $0x48] sm:$0xff]
        %v313 = vld [vmem:[%s302 + $0x50] sm:$0xff]
        %v314 = vld [vmem:[%s302 + $0x58] sm:$0xff]
        %v315 = vld [vmem:[%s302 + $0x60] sm:$0xff]
        %v316 = vld [vmem:[%s302 + $0x68] sm:$0xff]
        %v317 = vld [vmem:[%s302 + $0x70] sm:$0xff]
        %v318 = vld [vmem:[%s302 + $0x78] sm:$0xff]
        %319 = vmatpush.msra.mxu0 %v318
        %320 = vmatpush.msra.mxu0 %v317
        %321 = vmatpush.msra.mxu0 %v316
        %322 = vmatpush.msra.mxu0 %v315
        %323 = vmatpush.msra.mxu0 %v314
        %324 = vmatpush.msra.mxu0 %v313
        %325 = vmatpush.msra.mxu0 %v312
        %326 = vmatpush.msra.mxu0 %v311
        %327 = vmatpush.msra.mxu0 %v310
        %328 = vmatpush.msra.mxu0 %v309
        %329 = vmatpush.msra.mxu0 %v308
        %330 = vmatpush.msra.mxu0 %v307
        %331 = vmatpush.msra.mxu0 %v306
        %332 = vmatpush.msra.mxu0 %v305
        %333 = vmatpush.msra.mxu0 %v304
        %334 = vmatpush.msra.mxu0 %v303
        %335 = vmatmul.f32.gmra.mxu0 %v277
        %v336 = vpop.f32.mrf.mxu0
        %v337 = vadd.f32 0.0, %v336
        %338 = vmatmul.f32.gmra.mxu0 %v278
        %v339 = vpop.f32.mrf.mxu0
        %v340 = vadd.f32 0.0, %v339
        %341 = vmatmul.f32.gmra.mxu0 %v279
        %v342 = vpop.f32.mrf.mxu0
        %v343 = vadd.f32 0.0, %v342
        %344 = vmatmul.f32.gmra.mxu0 %v280
        %v345 = vpop.f32.mrf.mxu0
        %v346 = vadd.f32 0.0, %v345
        %347 = vmatmul.f32.gmra.mxu0 %v281
        %v348 = vpop.f32.mrf.mxu0
        %v349 = vadd.f32 0.0, %v348
        %350 = vmatmul.f32.gmra.mxu0 %v282
        %v351 = vpop.f32.mrf.mxu0
        %v352 = vadd.f32 0.0, %v351
        %353 = vmatmul.f32.gmra.mxu0 %v283
        %v354 = vpop.f32.mrf.mxu0
        %v355 = vadd.f32 0.0, %v354
        %356 = vmatmul.f32.gmra.mxu0 %v284
        %v357 = vpop.f32.mrf.mxu0
        %v358 = vadd.f32 0.0, %v357
        %359 = vmatmul.f32.gmra.mxu0 %v285
        %v360 = vpop.f32.mrf.mxu0
        %v361 = vadd.f32 0.0, %v360
        %362 = vdwg.mxu0
        %363 = vmatpush.msra.mxu0 %v301
        %364 = vmatpush.msra.mxu0 %v300
        %365 = vmatpush.msra.mxu0 %v299
        %366 = vmatpush.msra.mxu0 %v298
        %367 = vmatpush.msra.mxu0 %v297
        %368 = vmatpush.msra.mxu0 %v296
        %369 = vmatpush.msra.mxu0 %v295
        %370 = vmatpush.msra.mxu0 %v294
        %371 = vmatpush.msra.mxu0 %v293
        %372 = vmatpush.msra.mxu0 %v292
        %373 = vmatpush.msra.mxu0 %v291
        %374 = vmatpush.msra.mxu0 %v290
        %375 = vmatpush.msra.mxu0 %v289
        %376 = vmatpush.msra.mxu0 %v288
        %377 = vmatpush.msra.mxu0 %v287
        %378 = vmatpush.msra.mxu0 %v286
        %379 = vmatmul.f32.gmra.mxu0 %v268
        %v380 = vpop.f32.mrf.mxu0
        %v381 = vadd.f32 %v337, %v380
        %382 = vmatmul.f32.gmra.mxu0 %v269
        %v383 = vpop.f32.mrf.mxu0
        %v384 = vadd.f32 %v340, %v383
        %385 = vmatmul.f32.gmra.mxu0 %v270
        %v386 = vpop.f32.mrf.mxu0
        %v387 = vadd.f32 %v343, %v386
        %388 = vmatmul.f32.gmra.mxu0 %v271
        %v389 = vpop.f32.mrf.mxu0
        %v390 = vadd.f32 %v346, %v389
        %391 = vmatmul.f32.gmra.mxu0 %v272
        %v392 = vpop.f32.mrf.mxu0
        %v393 = vadd.f32 %v349, %v392
        %394 = vmatmul.f32.gmra.mxu0 %v273
        %v395 = vpop.f32.mrf.mxu0
        %v396 = vadd.f32 %v352, %v395
        %397 = vmatmul.f32.gmra.mxu0 %v274
        %v398 = vpop.f32.mrf.mxu0
        %v399 = vadd.f32 %v355, %v398
        %400 = vmatmul.f32.gmra.mxu0 %v275
        %v401 = vpop.f32.mrf.mxu0
        %v402 = vadd.f32 %v358, %v401
        %403 = vmatmul.f32.gmra.mxu0 %v276
        %v404 = vpop.f32.mrf.mxu0
        %v405 = vadd.f32 %v361, %v404
        %406 = vdwg.mxu0
        %v407 = vld [vmem:[%s264] sm:$0xff]
        %v408 = vld [vmem:[%s264 + $0x8] sm:$0xff]
        %v409 = vld [vmem:[%s264 + $0x10] sm:$0xff]
        %v410 = vld [vmem:[%s264 + $0x18] sm:$0xff]
        %v411 = vld [vmem:[%s264 + $0x20] sm:$0xff]
        %v412 = vld [vmem:[%s264 + $0x28] sm:$0xff]
        %v413 = vld [vmem:[%s264 + $0x30] sm:$0xff]
        %v414 = vld [vmem:[%s264 + $0x38] sm:$0xff]
        %v415 = vld [vmem:[%s264 + $0x40] sm:$0xff]
        %v416 = vld [vmem:[%s264 + $0x1] sm:$0xff]
        %v417 = vld [vmem:[%s264 + $0x9] sm:$0xff]
        %v418 = vld [vmem:[%s264 + $0x11] sm:$0xff]
        %v419 = vld [vmem:[%s264 + $0x19] sm:$0xff]
        %v420 = vld [vmem:[%s264 + $0x21] sm:$0xff]
        %v421 = vld [vmem:[%s264 + $0x29] sm:$0xff]
        %v422 = vld [vmem:[%s264 + $0x31] sm:$0xff]
        %v423 = vld [vmem:[%s264 + $0x39] sm:$0xff]
        %v424 = vld [vmem:[%s264 + $0x41] sm:$0xff]
        %s425 = scalar_lea.vmem [#allocation2], 256
        %v426 = vld [vmem:[%s425] sm:$0xff]
        %v427 = vld [vmem:[%s425 + $0x8] sm:$0xff]
        %v428 = vld [vmem:[%s425 + $0x10] sm:$0xff]
        %v429 = vld [vmem:[%s425 + $0x18] sm:$0xff]
        %v430 = vld [vmem:[%s425 + $0x20] sm:$0xff]
        %v431 = vld [vmem:[%s425 + $0x28] sm:$0xff]
        %v432 = vld [vmem:[%s425 + $0x30] sm:$0xff]
        %v433 = vld [vmem:[%s425 + $0x38] sm:$0xff]
        %v434 = vld [vmem:[%s425 + $0x40] sm:$0xff]
        %v435 = vld [vmem:[%s425 + $0x48] sm:$0xff]
        %v436 = vld [vmem:[%s425 + $0x50] sm:$0xff]
        %v437 = vld [vmem:[%s425 + $0x58] sm:$0xff]
        %v438 = vld [vmem:[%s425 + $0x60] sm:$0xff]
        %v439 = vld [vmem:[%s425 + $0x68] sm:$0xff]
        %v440 = vld [vmem:[%s425 + $0x70] sm:$0xff]
        %v441 = vld [vmem:[%s425 + $0x78] sm:$0xff]
        %442 = vmatpush.msra.mxu0 %v441
        %443 = vmatpush.msra.mxu0 %v440
        %444 = vmatpush.msra.mxu0 %v439
        %445 = vmatpush.msra.mxu0 %v438
        %446 = vmatpush.msra.mxu0 %v437
        %447 = vmatpush.msra.mxu0 %v436
        %448 = vmatpush.msra.mxu0 %v435
        %449 = vmatpush.msra.mxu0 %v434
        %450 = vmatpush.msra.mxu0 %v433
        %451 = vmatpush.msra.mxu0 %v432
        %452 = vmatpush.msra.mxu0 %v431
        %453 = vmatpush.msra.mxu0 %v430
        %454 = vmatpush.msra.mxu0 %v429
        %455 = vmatpush.msra.mxu0 %v428
        %456 = vmatpush.msra.mxu0 %v427
        %457 = vmatpush.msra.mxu0 %v426
        %458 = vmatmul.f32.gmra.mxu0 %v407
        %v459 = vpop.f32.mrf.mxu0
        %v460 = vadd.f32 0.0, %v459
        %461 = vmatmul.f32.gmra.mxu0 %v408
        %v462 = vpop.f32.mrf.mxu0
        %v463 = vadd.f32 0.0, %v462
        %464 = vmatmul.f32.gmra.mxu0 %v409
        %v465 = vpop.f32.mrf.mxu0
        %v466 = vadd.f32 0.0, %v465
        %467 = vmatmul.f32.gmra.mxu0 %v410
        %v468 = vpop.f32.mrf.mxu0
        %v469 = vadd.f32 0.0, %v468
        %470 = vmatmul.f32.gmra.mxu0 %v411
        %v471 = vpop.f32.mrf.mxu0
        %v472 = vadd.f32 0.0, %v471
        %473 = vmatmul.f32.gmra.mxu0 %v412
        %v474 = vpop.f32.mrf.mxu0
        %v475 = vadd.f32 0.0, %v474
        %476 = vmatmul.f32.gmra.mxu0 %v413
        %v477 = vpop.f32.mrf.mxu0
        %v478 = vadd.f32 0.0, %v477
        %479 = vmatmul.f32.gmra.mxu0 %v414
        %v480 = vpop.f32.mrf.mxu0
        %v481 = vadd.f32 0.0, %v480
        %482 = vmatmul.f32.gmra.mxu0 %v415
        %v483 = vpop.f32.mrf.mxu0
        %v484 = vadd.f32 0.0, %v483
        %485 = vdwg.mxu0
        %v486 = vadd.f32 %v381, %v460
        %v487 = vadd.f32 %v384, %v463
        %v488 = vadd.f32 %v387, %v466
        %v489 = vadd.f32 %v390, %v469
        %v490 = vadd.f32 %v393, %v472
        %v491 = vadd.f32 %v396, %v475
        %v492 = vadd.f32 %v399, %v478
        %v493 = vadd.f32 %v402, %v481
        %v494 = vadd.f32 %v405, %v484
        %s495 = scalar_lea.vmem [#allocation2], 384
        %v496 = vld [vmem:[%s495] sm:$0xff]
        %v497 = vld [vmem:[%s495 + $0x8] sm:$0xff]
        %v498 = vld [vmem:[%s495 + $0x10] sm:$0xff]
        %v499 = vld [vmem:[%s495 + $0x18] sm:$0xff]
        %v500 = vld [vmem:[%s495 + $0x20] sm:$0xff]
        %v501 = vld [vmem:[%s495 + $0x28] sm:$0xff]
        %v502 = vld [vmem:[%s495 + $0x30] sm:$0xff]
        %v503 = vld [vmem:[%s495 + $0x38] sm:$0xff]
        %v504 = vld [vmem:[%s495 + $0x40] sm:$0xff]
        %v505 = vld [vmem:[%s495 + $0x48] sm:$0xff]
        %v506 = vld [vmem:[%s495 + $0x50] sm:$0xff]
        %v507 = vld [vmem:[%s495 + $0x58] sm:$0xff]
        %v508 = vld [vmem:[%s495 + $0x60] sm:$0xff]
        %v509 = vld [vmem:[%s495 + $0x68] sm:$0xff]
        %v510 = vld [vmem:[%s495 + $0x70] sm:$0xff]
        %v511 = vld [vmem:[%s495 + $0x78] sm:$0xff]
        %512 = vmatpush.msra.mxu0 %v511
        %513 = vmatpush.msra.mxu0 %v510
        %514 = vmatpush.msra.mxu0 %v509
        %515 = vmatpush.msra.mxu0 %v508
        %516 = vmatpush.msra.mxu0 %v507
        %517 = vmatpush.msra.mxu0 %v506
        %518 = vmatpush.msra.mxu0 %v505
        %519 = vmatpush.msra.mxu0 %v504
        %520 = vmatpush.msra.mxu0 %v503
        %521 = vmatpush.msra.mxu0 %v502
        %522 = vmatpush.msra.mxu0 %v501
        %523 = vmatpush.msra.mxu0 %v500
        %524 = vmatpush.msra.mxu0 %v499
        %525 = vmatpush.msra.mxu0 %v498
        %526 = vmatpush.msra.mxu0 %v497
        %527 = vmatpush.msra.mxu0 %v496
        %528 = vmatmul.f32.gmra.mxu0 %v416
        %v529 = vpop.f32.mrf.mxu0
        %v530 = vadd.f32 0.0, %v529
        %531 = vmatmul.f32.gmra.mxu0 %v417
        %v532 = vpop.f32.mrf.mxu0
        %v533 = vadd.f32 0.0, %v532
        %534 = vmatmul.f32.gmra.mxu0 %v418
        %v535 = vpop.f32.mrf.mxu0
        %v536 = vadd.f32 0.0, %v535
        %537 = vmatmul.f32.gmra.mxu0 %v419
        %v538 = vpop.f32.mrf.mxu0
        %v539 = vadd.f32 0.0, %v538
        %540 = vmatmul.f32.gmra.mxu0 %v420
        %v541 = vpop.f32.mrf.mxu0
        %v542 = vadd.f32 0.0, %v541
        %543 = vmatmul.f32.gmra.mxu0 %v421
        %v544 = vpop.f32.mrf.mxu0
        %v545 = vadd.f32 0.0, %v544
        %546 = vmatmul.f32.gmra.mxu0 %v422
        %v547 = vpop.f32.mrf.mxu0
        %v548 = vadd.f32 0.0, %v547
        %549 = vmatmul.f32.gmra.mxu0 %v423
        %v550 = vpop.f32.mrf.mxu0
        %v551 = vadd.f32 0.0, %v550
        %552 = vmatmul.f32.gmra.mxu0 %v424
        %v553 = vpop.f32.mrf.mxu0
        %v554 = vadd.f32 0.0, %v553
        %555 = vdwg.mxu0
        %v556 = vadd.f32 %v486, %v530
        %v557 = vadd.f32 %v487, %v533
        %v558 = vadd.f32 %v488, %v536
        %v559 = vadd.f32 %v489, %v539
        %v560 = vadd.f32 %v490, %v542
        %v561 = vadd.f32 %v491, %v545
        %v562 = vadd.f32 %v492, %v548
        %v563 = vadd.f32 %v493, %v551
        %v564 = vadd.f32 %v494, %v554
        %v565 = vld [vmem:[%s259 + $0x9] sm:$0xff]
        %v566 = vld [vmem:[%s259 + $0x11] sm:$0xff]
        %v567 = vld [vmem:[%s259 + $0x19] sm:$0xff]
        %v568 = vld [vmem:[%s259 + $0x21] sm:$0xff]
        %v569 = vld [vmem:[%s259 + $0x29] sm:$0xff]
        %v570 = vld [vmem:[%s259 + $0x31] sm:$0xff]
        %v571 = vld [vmem:[%s259 + $0x39] sm:$0xff]
        %v572 = vld [vmem:[%s259 + $0x41] sm:$0xff]
        %v573 = vld [vmem:[%s259 + $0x49] sm:$0xff]
        %v574 = vld [vmem:[%s259 + $0xa] sm:$0xff]
        %v575 = vld [vmem:[%s259 + $0x12] sm:$0xff]
        %v576 = vld [vmem:[%s259 + $0x1a] sm:$0xff]
        %v577 = vld [vmem:[%s259 + $0x22] sm:$0xff]
        %v578 = vld [vmem:[%s259 + $0x2a] sm:$0xff]
        %v579 = vld [vmem:[%s259 + $0x32] sm:$0xff]
        %v580 = vld [vmem:[%s259 + $0x3a] sm:$0xff]
        %v581 = vld [vmem:[%s259 + $0x42] sm:$0xff]
        %v582 = vld [vmem:[%s259 + $0x4a] sm:$0xff]
        %s583 = scalar_lea.vmem [#allocation2], 512
        %v584 = vld [vmem:[%s583] sm:$0xff]
        %v585 = vld [vmem:[%s583 + $0x8] sm:$0xff]
        %v586 = vld [vmem:[%s583 + $0x10] sm:$0xff]
        %v587 = vld [vmem:[%s583 + $0x18] sm:$0xff]
        %v588 = vld [vmem:[%s583 + $0x20] sm:$0xff]
        %v589 = vld [vmem:[%s583 + $0x28] sm:$0xff]
        %v590 = vld [vmem:[%s583 + $0x30] sm:$0xff]
        %v591 = vld [vmem:[%s583 + $0x38] sm:$0xff]
        %v592 = vld [vmem:[%s583 + $0x40] sm:$0xff]
        %v593 = vld [vmem:[%s583 + $0x48] sm:$0xff]
        %v594 = vld [vmem:[%s583 + $0x50] sm:$0xff]
        %v595 = vld [vmem:[%s583 + $0x58] sm:$0xff]
        %v596 = vld [vmem:[%s583 + $0x60] sm:$0xff]
        %v597 = vld [vmem:[%s583 + $0x68] sm:$0xff]
        %v598 = vld [vmem:[%s583 + $0x70] sm:$0xff]
        %v599 = vld [vmem:[%s583 + $0x78] sm:$0xff]
        %600 = vmatpush.msra.mxu0 %v599
        %601 = vmatpush.msra.mxu0 %v598
        %602 = vmatpush.msra.mxu0 %v597
        %603 = vmatpush.msra.mxu0 %v596
        %604 = vmatpush.msra.mxu0 %v595
        %605 = vmatpush.msra.mxu0 %v594
        %606 = vmatpush.msra.mxu0 %v593
        %607 = vmatpush.msra.mxu0 %v592
        %608 = vmatpush.msra.mxu0 %v591
        %609 = vmatpush.msra.mxu0 %v590
        %610 = vmatpush.msra.mxu0 %v589
        %611 = vmatpush.msra.mxu0 %v588
        %612 = vmatpush.msra.mxu0 %v587
        %613 = vmatpush.msra.mxu0 %v586
        %614 = vmatpush.msra.mxu0 %v585
        %615 = vmatpush.msra.mxu0 %v584
        %616 = vmatmul.f32.gmra.mxu0 %v565
        %v617 = vpop.f32.mrf.mxu0
        %v618 = vadd.f32 0.0, %v617
        %619 = vmatmul.f32.gmra.mxu0 %v566
        %v620 = vpop.f32.mrf.mxu0
        %v621 = vadd.f32 0.0, %v620
        %622 = vmatmul.f32.gmra.mxu0 %v567
        %v623 = vpop.f32.mrf.mxu0
        %v624 = vadd.f32 0.0, %v623
        %625 = vmatmul.f32.gmra.mxu0 %v568
        %v626 = vpop.f32.mrf.mxu0
        %v627 = vadd.f32 0.0, %v626
        %628 = vmatmul.f32.gmra.mxu0 %v569
        %v629 = vpop.f32.mrf.mxu0
        %v630 = vadd.f32 0.0, %v629
        %631 = vmatmul.f32.gmra.mxu0 %v570
        %v632 = vpop.f32.mrf.mxu0
        %v633 = vadd.f32 0.0, %v632
        %634 = vmatmul.f32.gmra.mxu0 %v571
        %v635 = vpop.f32.mrf.mxu0
        %v636 = vadd.f32 0.0, %v635
        %637 = vmatmul.f32.gmra.mxu0 %v572
        %v638 = vpop.f32.mrf.mxu0
        %v639 = vadd.f32 0.0, %v638
        %640 = vmatmul.f32.gmra.mxu0 %v573
        %v641 = vpop.f32.mrf.mxu0
        %v642 = vadd.f32 0.0, %v641
        %643 = vdwg.mxu0
        %v644 = vadd.f32 %v556, %v618
        %v645 = vadd.f32 %v557, %v621
        %v646 = vadd.f32 %v558, %v624
        %v647 = vadd.f32 %v559, %v627
        %v648 = vadd.f32 %v560, %v630
        %v649 = vadd.f32 %v561, %v633
        %v650 = vadd.f32 %v562, %v636
        %v651 = vadd.f32 %v563, %v639
        %v652 = vadd.f32 %v564, %v642
        %s653 = scalar_lea.vmem [#allocation2], 640
        %v654 = vld [vmem:[%s653] sm:$0xff]
        %v655 = vld [vmem:[%s653 + $0x8] sm:$0xff]
        %v656 = vld [vmem:[%s653 + $0x10] sm:$0xff]
        %v657 = vld [vmem:[%s653 + $0x18] sm:$0xff]
        %v658 = vld [vmem:[%s653 + $0x20] sm:$0xff]
        %v659 = vld [vmem:[%s653 + $0x28] sm:$0xff]
        %v660 = vld [vmem:[%s653 + $0x30] sm:$0xff]
        %v661 = vld [vmem:[%s653 + $0x38] sm:$0xff]
        %v662 = vld [vmem:[%s653 + $0x40] sm:$0xff]
        %v663 = vld [vmem:[%s653 + $0x48] sm:$0xff]
        %v664 = vld [vmem:[%s653 + $0x50] sm:$0xff]
        %v665 = vld [vmem:[%s653 + $0x58] sm:$0xff]
        %v666 = vld [vmem:[%s653 + $0x60] sm:$0xff]
        %v667 = vld [vmem:[%s653 + $0x68] sm:$0xff]
        %v668 = vld [vmem:[%s653 + $0x70] sm:$0xff]
        %v669 = vld [vmem:[%s653 + $0x78] sm:$0xff]
        %670 = vmatpush.msra.mxu0 %v669
        %671 = vmatpush.msra.mxu0 %v668
        %672 = vmatpush.msra.mxu0 %v667
        %673 = vmatpush.msra.mxu0 %v666
        %674 = vmatpush.msra.mxu0 %v665
        %675 = vmatpush.msra.mxu0 %v664
        %676 = vmatpush.msra.mxu0 %v663
        %677 = vmatpush.msra.mxu0 %v662
        %678 = vmatpush.msra.mxu0 %v661
        %679 = vmatpush.msra.mxu0 %v660
        %680 = vmatpush.msra.mxu0 %v659
        %681 = vmatpush.msra.mxu0 %v658
        %682 = vmatpush.msra.mxu0 %v657
        %683 = vmatpush.msra.mxu0 %v656
        %684 = vmatpush.msra.mxu0 %v655
        %685 = vmatpush.msra.mxu0 %v654
        %686 = vmatmul.f32.gmra.mxu0 %v574
        %v687 = vpop.f32.mrf.mxu0
        %v688 = vadd.f32 0.0, %v687
        %689 = vmatmul.f32.gmra.mxu0 %v575
        %v690 = vpop.f32.mrf.mxu0
        %v691 = vadd.f32 0.0, %v690
        %692 = vmatmul.f32.gmra.mxu0 %v576
        %v693 = vpop.f32.mrf.mxu0
        %v694 = vadd.f32 0.0, %v693
        %695 = vmatmul.f32.gmra.mxu0 %v577
        %v696 = vpop.f32.mrf.mxu0
        %v697 = vadd.f32 0.0, %v696
        %698 = vmatmul.f32.gmra.mxu0 %v578
        %v699 = vpop.f32.mrf.mxu0
        %v700 = vadd.f32 0.0, %v699
        %701 = vmatmul.f32.gmra.mxu0 %v579
        %v702 = vpop.f32.mrf.mxu0
        %v703 = vadd.f32 0.0, %v702
        %704 = vmatmul.f32.gmra.mxu0 %v580
        %v705 = vpop.f32.mrf.mxu0
        %v706 = vadd.f32 0.0, %v705
        %707 = vmatmul.f32.gmra.mxu0 %v581
        %v708 = vpop.f32.mrf.mxu0
        %v709 = vadd.f32 0.0, %v708
        %710 = vmatmul.f32.gmra.mxu0 %v582
        %v711 = vpop.f32.mrf.mxu0
        %v712 = vadd.f32 0.0, %v711
        %713 = vdwg.mxu0
        %v714 = vadd.f32 %v644, %v688
        %v715 = vadd.f32 %v645, %v691
        %v716 = vadd.f32 %v646, %v694
        %v717 = vadd.f32 %v647, %v697
        %v718 = vadd.f32 %v648, %v700
        %v719 = vadd.f32 %v649, %v703
        %v720 = vadd.f32 %v650, %v706
        %v721 = vadd.f32 %v651, %v709
        %v722 = vadd.f32 %v652, %v712
        %v723 = vld [vmem:[%s267] sm:$0x1]
        %v725 = vperm.slane %v723, 0
        %v727 = vadd.f32 %v714, %v725
        %v728 = vadd.f32 %v715, %v725
        %v729 = vadd.f32 %v716, %v725
        %v730 = vadd.f32 %v717, %v725
        %v731 = vadd.f32 %v718, %v725
        %v732 = vadd.f32 %v719, %v725
        %v733 = vadd.f32 %v720, %v725
        %v734 = vadd.f32 %v721, %v725
        %v735 = vadd.f32 %v722, %v725
        %736 = vst [vmem:[%s254] sm:$0xff] %v727
        %737 = vst [vmem:[%s254 + $0x8] sm:$0xff] %v728
        %738 = vst [vmem:[%s254 + $0x10] sm:$0xff] %v729
        %739 = vst [vmem:[%s254 + $0x18] sm:$0xff] %v730
        %740 = vst [vmem:[%s254 + $0x20] sm:$0xff] %v731
        %741 = vst [vmem:[%s254 + $0x28] sm:$0xff] %v732
        %742 = vst [vmem:[%s254 + $0x30] sm:$0xff] %v733
        %743 = vst [vmem:[%s254 + $0x38] sm:$0xff] %v734
        %744 = vst [vmem:[%s254 + $0x40] sm:$0xff] %v735
        %s745 = sand.u32 %s145, 1
        %s746 = scalar_lea.sflag [#allocation4], %s745
        %s747 = sand.u32 %s145, 1
        %s748 = smul.addr %s747, 72
        %s749 = scalar_lea.vmem [#allocation5], %s748
        // Predicated region
        $region41: #{tpu_custom_call.1} parent=35 // pred_check
          %p750 = pneg %p155
        $region42: #{tpu_custom_call.1} parent=35 // pred_check_branch
          %752 = sbr.rel (%p750) target = $region44
        $region43: #{tpu_custom_call.1} parent=35 // pred_region
          %754 = vsyncadd %s746, 0
          %s755 = smul.addr %s23, 9
          %s756 = sadd.s32 %s24, %s755
          %s757 = smul.addr %s756, 8
          %s758 = scalar_lea.hbm %s4, %s757
          %s759 = sshll.u32 %s749, 4
          %s760 = int_to_ptr.vmem [resolvable:$true] %s759
          %s761 = sshll.u32 %s758, 4
          %s762 = int_to_ptr.hbm [resolvable:$true] %s761
          %767 = dma.vmem_to_hbm [thread:$0]  %s760, 1152, %s762, %s746, 128, 128, 8
        $region44: #{tpu_custom_call.1} parent=35 // pred_fallthru
          _
      $region36: #{tpu_custom_call.1} parent=5 // pred_fallthru
        _
      %p768 = scmp.le.s32.totalorder 2, %s14
      // Predicated region
      $region45: #{tpu_custom_call.1} parent=5 // pred_check
        %p769 = pneg %p768
      $region46: #{tpu_custom_call.1} parent=5 // pred_check_branch
        %771 = sbr.rel (%p769) target = $region48
      $region47: #{tpu_custom_call.1} parent=5 // pred_region
        %s772 = ssub.s32 %s14, 2
        // Predicated region
        $region49: #{tpu_custom_call.1} parent=47 // pred_check
          %p773 = pneg %p161
        $region50: #{tpu_custom_call.1} parent=47 // pred_check_branch
          %775 = sbr.rel (%p773) target = $region52
        $region51: #{tpu_custom_call.1} parent=47 // pred_region
          %s776 = sand.u32 %s146, 1
          %s777 = scalar_lea.sflag [#allocation4], %s776
          %s778 = sand.u32 %s146, 1
          %s779 = smul.addr %s778, 72
          %s780 = scalar_lea.vmem [#allocation5], %s779
          %782 = dma.done %s777, 1152
        $region52: #{tpu_custom_call.1} parent=47 // pred_fallthru
          _
      $region48: #{tpu_custom_call.1} parent=5 // pred_fallthru
        _
    $region6: #{tpu_custom_call.1} parent=1 // loop_footer
      %s18 = sadd.s32 1, %s14
    $region7: #{tpu_custom_call.1} parent=1 // loop_footer_branch
      %13 = sbr.rel target = $region3
    $region8: #{tpu_custom_call.1} parent=1 // loop_exit
      _
    %783 = vsyncpa [#allocation3], 1
    %s784 = scalar_lea.sflag [#allocation3], 1
    %785 = vsyncpa %s784, 1
    %786 = vsyncpa [#allocation4], 1
    %s787 = scalar_lea.sflag [#allocation4], 1
    %788 = vsyncpa %s787, 1

</llo_original>
